<compile_context>
chip_gen: v7x
topology: tpu7x:2x2x1
jax: 0.10.0
libtpu: 0.0.40
codegen_flags: <defaults>
</compile_context>

<pallas_src>
import jax
import jax.numpy as jnp
from jax.experimental import pallas as pl
from jax.experimental.pallas import tpu as pltpu


def attention_head_kernel(x_ref, w_ref, b_ref, o_ref):
    # Per grid step: one batch element.
    #   x_ref : (1, S, E)  f32
    #   w_ref : (3, E, H)  f32   (slot 0 = Wq * 1/sqrt(H), 1 = Wk, 2 = Wv)
    #   b_ref : (3, 1, H)  f32   (slot 0 = bq * 1/sqrt(H), 1 = bk, 2 = bv)
    #   o_ref : (1, S, H)
    x = x_ref[0].astype(jnp.bfloat16)          # (S, E) -- MXU operand dtype
    w = w_ref[...].astype(jnp.bfloat16)        # (3, E, H) -- one cast pass
    b = b_ref[...]                             # (3, 1, H) f32

    # Projections: leading-axis views of the stacked weights (no lane slicing).
    # f32 accumulation on the MXU, f32 bias add.
    q = jnp.dot(x, w[0], preferred_element_type=jnp.float32) + b[0]   # (S, H), scale pre-folded
    k = jnp.dot(x, w[1], preferred_element_type=jnp.float32) + b[1]   # (S, H)
    v = jnp.dot(x, w[2], preferred_element_type=jnp.float32) + b[2]   # (S, H)

    # Scores: contract the last axes directly (no materialized k transpose).
    scores = jnp.einsum(
        "qd,kd->qk",
        q.astype(jnp.bfloat16), k.astype(jnp.bfloat16),
        preferred_element_type=jnp.float32)                           # (S, S)

    # Numerically stable softmax, all in f32 (v5e has no bf16 VPU/EUP).
    m = jnp.max(scores, axis=-1, keepdims=True)
    p = jnp.exp(scores - m)
    denom = jnp.sum(p, axis=-1, keepdims=True)
    probs = p * pl.reciprocal(denom, approx=True)       # EUP slot, ~free

    # PV matmul: cast probs to v's MXU dtype (avoids a multi-pass f32 matmul).
    v_mxu = v.astype(jnp.bfloat16)
    out = jnp.einsum("qk,kd->qd", probs.astype(v_mxu.dtype), v_mxu,
                     preferred_element_type=jnp.float32)              # (S, H)

    o_ref[0] = out.astype(o_ref.dtype)


def attention_head(x, wq, bq, wk, bk, wv, bv):
    """x: (B, S, E); w*: (E, H); b*: (1, H). Returns (B, S, H)."""
    B, S, E = x.shape
    H = wq.shape[1]

    # Host-side prep: stack along a LEADING axis (kernel takes free views) and
    # fold the attention scale into the Q projection.
    scale = 1.0 / jnp.sqrt(jnp.float32(H))
    w_qkv = jnp.stack([wq * scale, wk, wv], axis=0)      # (3, E, H)
    b_qkv = jnp.stack([bq * scale, bk, bv], axis=0)      # (3, 1, H)

    flops = B * (3 * 2 * S * E * H + 2 * 2 * S * S * H)
    bytes_accessed = 4 * (B * S * E + 3 * E * H + 3 * H + B * S * H)

    return pl.pallas_call(
        attention_head_kernel,
        out_shape=jax.ShapeDtypeStruct((B, S, H), x.dtype),
        grid_spec=pltpu.PrefetchScalarGridSpec(
            num_scalar_prefetch=0,
            grid=(B,),
            in_specs=[
                pl.BlockSpec((1, S, E), lambda b: (b, 0, 0)),   # x (per batch)
                pl.BlockSpec((3, E, H), lambda b: (0, 0, 0)),   # stacked W (resident)
                pl.BlockSpec((3, 1, H), lambda b: (0, 0, 0)),   # stacked b (resident)
            ],
            out_specs=pl.BlockSpec((1, S, H), lambda b: (b, 0, 0)),
        ),
        compiler_params=pltpu.CompilerParams(
            dimension_semantics=("parallel",)),                 # 2 TCs on v7x
        cost_estimate=pl.CostEstimate(
            flops=flops, transcendentals=B * S * (S + 1),
            bytes_accessed=bytes_accessed),
    )(x, w_qkv, b_qkv)


def reference(x, wq, bq, wk, bk, wv, bv):
    q = x @ wq + bq
    k = x @ wk + bk
    v = x @ wv + bv
    scale = 1.0 / jnp.sqrt(jnp.float32(q.shape[-1]))
    scores = jnp.einsum("bqd,bkd->bqk", q, k) * scale
    w = jax.nn.softmax(scores, axis=-1)
    return jnp.einsum("bqk,bkd->bqd", w, v)


if __name__ == "__main__":
    # (batch_size, seq_len, embed_dim) -> (batch_size, seq_len, head_dim)
    B, S, E, H = 2, 8, 32, 16

    key = jax.random.PRNGKey(0)
    kx, kq, kk, kv, kbq, kbk, kbv = jax.random.split(key, 7)

    x = jax.random.normal(kx, (B, S, E), dtype=jnp.float32)

    # Deterministic parameter init (nn.Linear-like scale).
    scale = 1.0 / jnp.sqrt(jnp.float32(E))
    wq = jax.random.uniform(kq, (E, H), jnp.float32, -scale, scale)
    wk = jax.random.uniform(kk, (E, H), jnp.float32, -scale, scale)
    wv = jax.random.uniform(kv, (E, H), jnp.float32, -scale, scale)
    bq = jax.random.uniform(kbq, (1, H), jnp.float32, -scale, scale)
    bk = jax.random.uniform(kbk, (1, H), jnp.float32, -scale, scale)
    bv = jax.random.uniform(kbv, (1, H), jnp.float32, -scale, scale)

    out = attention_head(x, wq, bq, wk, bk, wv, bv)
    out = jax.block_until_ready(out)

    ref = reference(x, wq, bq, wk, bk, wv, bv)
    assert out.shape == (B, S, H)
    # Tolerance accounts for the deliberate accuracy trades recommended in the
    # review: bf16 MXU operands (f32 accumulate) and the approximate (EUP)
    # reciprocal in the softmax denominator.  The reference is full f32.
    assert jnp.allclose(out, ref, atol=2e-2, rtol=2e-2), (
        float(jnp.max(jnp.abs(out - ref))))

    print("KERNEL_OK")
</pallas_src>

<mosaic_0001>
module attributes {stable_mosaic.version = 11 : i64} {
  func.func @attention_head_kernel(%arg0: i32, %arg1: memref<1x8x32xf32, #tpu.memory_space<vmem>>, %arg2: memref<3x32x16xf32, #tpu.memory_space<vmem>>, %arg3: memref<3x1x16xf32, #tpu.memory_space<vmem>>, %arg4: memref<1x8x16xf32, #tpu.memory_space<vmem>>) attributes {dimension_semantics = [#tpu.dimension_semantics<parallel>], iteration_bounds = array<i64: 2>, scalar_prefetch = 0 : i64, scratch_operands = 0 : i64, tpu.core_type = #tpu.core_type<tc>, window_params = [{transform_indices = @transform_0, window_bounds = array<i64: 1, 8, 32>}, {pipeline_mode = #tpu.pipeline_mode<synchronous>, transform_indices = @transform_1, window_bounds = array<i64: 3, 32, 16>}, {pipeline_mode = #tpu.pipeline_mode<synchronous>, transform_indices = @transform_2, window_bounds = array<i64: 3, 1, 16>}, {transform_indices = @transform_3, window_bounds = array<i64: 1, 8, 16>}]} {
    %c0 = arith.constant 0 : index
    %c0_0 = arith.constant 0 : index
    %c0_1 = arith.constant 0 : index
    %0 = vector.load %arg1[%c0, %c0_0, %c0_1] : memref<1x8x32xf32, #tpu.memory_space<vmem>>, vector<1x8x32xf32>
    %1 = vector.shape_cast %0 : vector<1x8x32xf32> to vector<8x32xf32>
    %2 = arith.truncf %1 : vector<8x32xf32> to vector<8x32xbf16>
    %c0_2 = arith.constant 0 : index
    %c0_3 = arith.constant 0 : index
    %c0_4 = arith.constant 0 : index
    %3 = vector.load %arg2[%c0_2, %c0_3, %c0_4] : memref<3x32x16xf32, #tpu.memory_space<vmem>>, vector<3x32x16xf32>
    %4 = arith.truncf %3 : vector<3x32x16xf32> to vector<3x32x16xbf16>
    %c0_5 = arith.constant 0 : index
    %c0_6 = arith.constant 0 : index
    %c0_7 = arith.constant 0 : index
    %5 = vector.load %arg3[%c0_5, %c0_6, %c0_7] : memref<3x1x16xf32, #tpu.memory_space<vmem>>, vector<3x1x16xf32>
    %6 = vector.extract_strided_slice %4 {offsets = [0, 0, 0], sizes = [1, 32, 16], strides = [1, 1, 1]} : vector<3x32x16xbf16> to vector<1x32x16xbf16>
    %7 = vector.shape_cast %6 : vector<1x32x16xbf16> to vector<32x16xbf16>
    %cst = arith.constant dense<0.000000e+00> : vector<8x16xf32>
    %8 = tpu.matmul %2, %7, %cst {dimension_numbers = #tpu.dot_dimension_numbers<[1], [0], [0], [1], [0, 0, 1, 1], [], []>} : vector<8x32xbf16>, vector<32x16xbf16>, vector<8x16xf32> -> vector<8x16xf32>
    %9 = vector.extract_strided_slice %5 {offsets = [0, 0, 0], sizes = [1, 1, 16], strides = [1, 1, 1]} : vector<3x1x16xf32> to vector<1x1x16xf32>
    %10 = vector.shape_cast %9 : vector<1x1x16xf32> to vector<1x16xf32>
    %11 = vector.broadcast %10 : vector<1x16xf32> to vector<8x16xf32>
    %12 = arith.addf %8, %11 : vector<8x16xf32>
    %13 = vector.extract_strided_slice %4 {offsets = [1, 0, 0], sizes = [1, 32, 16], strides = [1, 1, 1]} : vector<3x32x16xbf16> to vector<1x32x16xbf16>
    %14 = vector.shape_cast %13 : vector<1x32x16xbf16> to vector<32x16xbf16>
    %cst_8 = arith.constant dense<0.000000e+00> : vector<8x16xf32>
    %15 = tpu.matmul %2, %14, %cst_8 {dimension_numbers = #tpu.dot_dimension_numbers<[1], [0], [0], [1], [0, 0, 1, 1], [], []>} : vector<8x32xbf16>, vector<32x16xbf16>, vector<8x16xf32> -> vector<8x16xf32>
    %16 = vector.extract_strided_slice %5 {offsets = [1, 0, 0], sizes = [1, 1, 16], strides = [1, 1, 1]} : vector<3x1x16xf32> to vector<1x1x16xf32>
    %17 = vector.shape_cast %16 : vector<1x1x16xf32> to vector<1x16xf32>
    %18 = vector.broadcast %17 : vector<1x16xf32> to vector<8x16xf32>
    %19 = arith.addf %15, %18 : vector<8x16xf32>
    %20 = vector.extract_strided_slice %4 {offsets = [2, 0, 0], sizes = [1, 32, 16], strides = [1, 1, 1]} : vector<3x32x16xbf16> to vector<1x32x16xbf16>
    %21 = vector.shape_cast %20 : vector<1x32x16xbf16> to vector<32x16xbf16>
    %cst_9 = arith.constant dense<0.000000e+00> : vector<8x16xf32>
    %22 = tpu.matmul %2, %21, %cst_9 {dimension_numbers = #tpu.dot_dimension_numbers<[1], [0], [0], [1], [0, 0, 1, 1], [], []>} : vector<8x32xbf16>, vector<32x16xbf16>, vector<8x16xf32> -> vector<8x16xf32>
    %23 = vector.extract_strided_slice %5 {offsets = [2, 0, 0], sizes = [1, 1, 16], strides = [1, 1, 1]} : vector<3x1x16xf32> to vector<1x1x16xf32>
    %24 = vector.shape_cast %23 : vector<1x1x16xf32> to vector<1x16xf32>
    %25 = vector.broadcast %24 : vector<1x16xf32> to vector<8x16xf32>
    %26 = arith.addf %22, %25 : vector<8x16xf32>
    %27 = arith.truncf %12 : vector<8x16xf32> to vector<8x16xbf16>
    %28 = arith.truncf %19 : vector<8x16xf32> to vector<8x16xbf16>
    "tpu.trace_start"() <{level = 10 : i32, message = "qd,kd->qk"}> : () -> ()
    %cst_10 = arith.constant dense<0.000000e+00> : vector<8x8xf32>
    %29 = tpu.matmul %27, %28, %cst_10 {dimension_numbers = #tpu.dot_dimension_numbers<[1], [1], [0], [0], [0, 0, 1, 0], [], []>} : vector<8x16xbf16>, vector<8x16xbf16>, vector<8x8xf32> -> vector<8x8xf32>
    "tpu.trace_stop"() : () -> ()
    %cst_11 = arith.constant dense<0xFF800000> : vector<8xf32>
    %30 = vector.multi_reduction <maximumf>, %29, %cst_11 [1] : vector<8x8xf32> to vector<8xf32>
    %31 = vector.shape_cast %30 : vector<8xf32> to vector<8x1xf32>
    %32 = vector.broadcast %31 : vector<8x1xf32> to vector<8x8xf32>
    %33 = arith.subf %29, %32 : vector<8x8xf32>
    %34 = math.exp %33 : vector<8x8xf32>
    %cst_12 = arith.constant dense<0.000000e+00> : vector<8xf32>
    %35 = vector.multi_reduction <add>, %34, %cst_12 [1] : vector<8x8xf32> to vector<8xf32>
    %36 = vector.shape_cast %35 : vector<8xf32> to vector<8x1xf32>
    %37 = tpu.reciprocal %36 {approx = true} : vector<8x1xf32> -> vector<8x1xf32>
    %38 = vector.broadcast %37 : vector<8x1xf32> to vector<8x8xf32>
    %39 = arith.mulf %34, %38 : vector<8x8xf32>
    %40 = arith.truncf %26 : vector<8x16xf32> to vector<8x16xbf16>
    %41 = arith.truncf %39 : vector<8x8xf32> to vector<8x8xbf16>
    "tpu.trace_start"() <{level = 10 : i32, message = "qk,kd->qd"}> : () -> ()
    %cst_13 = arith.constant dense<0.000000e+00> : vector<8x16xf32>
    %42 = tpu.matmul %41, %40, %cst_13 {dimension_numbers = #tpu.dot_dimension_numbers<[1], [0], [0], [1], [0, 0, 1, 1], [], []>} : vector<8x8xbf16>, vector<8x16xbf16>, vector<8x16xf32> -> vector<8x16xf32>
    "tpu.trace_stop"() : () -> ()
    %c0_14 = arith.constant 0 : index
    %c0_15 = arith.constant 0 : index
    %c0_16 = arith.constant 0 : index
    %43 = vector.load %arg4[%c0_14, %c0_15, %c0_16] : memref<1x8x16xf32, #tpu.memory_space<vmem>>, vector<1x8x16xf32>
    %44 = vector.shape_cast %43 : vector<1x8x16xf32> to vector<8x16xf32>
    %45 = vector.shape_cast %42 : vector<8x16xf32> to vector<1x8x16xf32>
    tpu.vector_store %arg4[%c0_14, %c0_15, %c0_16], %45 {strides = array<i32>} : memref<1x8x16xf32, #tpu.memory_space<vmem>>, vector<1x8x16xf32>,
    return
  }
  func.func @transform_0(%arg0: i32) -> (i32, i32, i32) {
    %c0_i32 = arith.constant 0 : i32
    %c0_i32_0 = arith.constant 0 : i32
    %c0_i32_1 = arith.constant 0 : i32
    return %arg0, %c0_i32, %c0_i32_0 : i32, i32, i32
  }
  func.func @transform_1(%arg0: i32) -> (i32, i32, i32) {
    %c0_i32 = arith.constant 0 : i32
    %c0_i32_0 = arith.constant 0 : i32
    %c0_i32_1 = arith.constant 0 : i32
    %c0_i32_2 = arith.constant 0 : i32
    return %c0_i32, %c0_i32_0, %c0_i32_1 : i32, i32, i32
  }
  func.func @transform_2(%arg0: i32) -> (i32, i32, i32) {
    %c0_i32 = arith.constant 0 : i32
    %c0_i32_0 = arith.constant 0 : i32
    %c0_i32_1 = arith.constant 0 : i32
    %c0_i32_2 = arith.constant 0 : i32
    return %c0_i32, %c0_i32_0, %c0_i32_1 : i32, i32, i32
  }
  func.func @transform_3(%arg0: i32) -> (i32, i32, i32) {
    %c0_i32 = arith.constant 0 : i32
    %c0_i32_0 = arith.constant 0 : i32
    %c0_i32_1 = arith.constant 0 : i32
    return %arg0, %c0_i32, %c0_i32_0 : i32, i32, i32
  }
}

</mosaic_0001>

<llo_original>
// kernel: tpu_custom_call.1
$region0: #{tpu_custom_call.1}
  #allocation0 [shape = 'u32[]', space=smem, size = 0x4, offset = 0x4, fixed_abs, tag = 'smem constant byte address 0x4 - core index']
  #allocation1 [shape = 'u32[144,128]{1,0:T(1,128)}', space=vmem, size = 0x12000, scoped, tag = 'internal scratch']
  %s0 = inlined_call_operand.vmem [shape: f32[2,8,32], index: 0, kind: input, shape index: {}]
  %s1 = inlined_call_operand.vmem [shape: f32[3,32,16], index: 1, kind: input, shape index: {}]
  %s2 = inlined_call_operand.vmem [shape: f32[3,1,16], index: 2, kind: input, shape index: {}]
  %s3 = inlined_call_operand.hbm [shape: f32[2,8,16], index: 3, kind: output, shape index: {}]
  %s4 = sld [smem:[#allocation0]]
  $region45: #{tpu_custom_call.1} parent=0
    _
  %s6 = ssub.s32 1, %s4
  %s7 = scalar_select 0, %s6, %s4
  $region1: #{tpu_custom_call.1} parent=0
    #allocation2 [shape = 'u8[8192]{0}', space=vmem, size = 0x2000, scoped, tag = 'output window, operand 0']
    #allocation3 [shape = 's32[2]{0}', space=sflag, size = 0x8, scoped, tag = 'scoped memory for tpu_custom_call.1']
    %8 = vsyncpa [#allocation3], 0
    %s9 = scalar_lea.sflag [#allocation3], 1
    %10 = vsyncpa %s9, 0
    loop: start=0, step=1, limit=4
    $region2: #{tpu_custom_call.1} parent=1 // loop_pre_header
      _
    $region3: #{tpu_custom_call.1} parent=1 // loop_header
      %s12 = sphi 0, %s16
      %p13 = scmp.ge.s32.totalorder %s12, 4
      %s22 = sphi 0, %s24
      %s25 = sphi 0, %s22
      %s26 = sphi 0, %s25
      %s42 = sphi 0, %s26
      %s46 = sphi 0, %s46
      %s48 = sphi 0, %s46
      %s49 = sphi 0, %s48
      %s63 = sphi 0, %s49
      %s67 = sphi 0, %s67
      %s69 = sphi 0, %s67
      %s70 = sphi 0, %s69
      %s84 = sphi 0, %s70
      %s90 = sphi 0, %s92
      %s93 = sphi 0, %s90
      %s94 = sphi 0, %s93
      %s110 = sphi 0, %s94
    $region4: #{tpu_custom_call.1} parent=1 // loop_header_branch
      %15 = sbr.rel (%p13) target = $region8
    $region5: #{tpu_custom_call.1} parent=1 // loop_body
      %s17 = ssub.s32 %s12, 1
      %s18 = ssub.s32 %s12, 2
      %s19 = sadd.s32 %s12, 1
      %s20 = ssub.s32 %s12, %s19
      %p21 = scmp.eq.s32.totalorder %s20, 0
      %s23 = sadd.s32 %s22, 1
      %s24 = scalar_select %p21, %s22, %s23
      %p27 = pneg %p21
      %p28 = scmp.eq.s32.totalorder %s12, 1
      %p29 = por %p27, %p28
      %p30 = scmp.ne.s32.totalorder %s22, %s25
      %p31 = scmp.eq.s32.totalorder %s12, 0
      %p32 = por %p30, %p31
      %p33 = scmp.ne.s32.totalorder %s22, %s25
      %p34 = scmp.eq.s32.totalorder %s17, 1
      %p35 = por %p33, %p34
      %p36 = scmp.ne.s32.totalorder %s25, %s26
      %p37 = scmp.eq.s32.totalorder %s17, 0
      %p38 = por %p36, %p37
      %p39 = scmp.ne.s32.totalorder %s25, %s26
      %p40 = scmp.eq.s32.totalorder %s18, 1
      %p41 = por %p39, %p40
      %p43 = scmp.ne.s32.totalorder %s26, %s42
      %p44 = scmp.eq.s32.totalorder %s18, 0
      %p45 = por %p43, %p44
      %s47 = sadd.s32 %s46, 1
      %p50 = scmp.eq.s32.totalorder %s12, 1
      %p51 = scmp.ne.s32.totalorder %s46, %s48
      %p52 = scmp.eq.s32.totalorder %s12, 0
      %p53 = por %p51, %p52
      %p54 = scmp.ne.s32.totalorder %s46, %s48
      %p55 = scmp.eq.s32.totalorder %s17, 1
      %p56 = por %p54, %p55
      %p57 = scmp.ne.s32.totalorder %s48, %s49
      %p58 = scmp.eq.s32.totalorder %s17, 0
      %p59 = por %p57, %p58
      %p60 = scmp.ne.s32.totalorder %s48, %s49
      %p61 = scmp.eq.s32.totalorder %s18, 1
      %p62 = por %p60, %p61
      %p64 = scmp.ne.s32.totalorder %s49, %s63
      %p65 = scmp.eq.s32.totalorder %s18, 0
      %p66 = por %p64, %p65
      %s68 = sadd.s32 %s67, 1
      %p71 = scmp.eq.s32.totalorder %s12, 1
      %p72 = scmp.ne.s32.totalorder %s67, %s69
      %p73 = scmp.eq.s32.totalorder %s12, 0
      %p74 = por %p72, %p73
      %p75 = scmp.ne.s32.totalorder %s67, %s69
      %p76 = scmp.eq.s32.totalorder %s17, 1
      %p77 = por %p75, %p76
      %p78 = scmp.ne.s32.totalorder %s69, %s70
      %p79 = scmp.eq.s32.totalorder %s17, 0
      %p80 = por %p78, %p79
      %p81 = scmp.ne.s32.totalorder %s69, %s70
      %p82 = scmp.eq.s32.totalorder %s18, 1
      %p83 = por %p81, %p82
      %p85 = scmp.ne.s32.totalorder %s70, %s84
      %p86 = scmp.eq.s32.totalorder %s18, 0
      %p87 = por %p85, %p86
      %s88 = ssub.s32 %s12, %s19
      %p89 = scmp.eq.s32.totalorder %s88, 0
      %s91 = sadd.s32 %s90, 1
      %s92 = scalar_select %p89, %s90, %s91
      %p95 = pneg %p89
      %p96 = scmp.eq.s32.totalorder %s12, 1
      %p97 = por %p95, %p96
      %p98 = scmp.ne.s32.totalorder %s90, %s93
      %p99 = scmp.eq.s32.totalorder %s12, 0
      %p100 = por %p98, %p99
      %p101 = scmp.ne.s32.totalorder %s90, %s93
      %p102 = scmp.eq.s32.totalorder %s17, 1
      %p103 = por %p101, %p102
      %p104 = scmp.ne.s32.totalorder %s93, %s94
      %p105 = scmp.eq.s32.totalorder %s17, 0
      %p106 = por %p104, %p105
      %p107 = scmp.ne.s32.totalorder %s93, %s94
      %p108 = scmp.eq.s32.totalorder %s18, 1
      %p109 = por %p107, %p108
      %p111 = scmp.ne.s32.totalorder %s94, %s110
      %p112 = scmp.eq.s32.totalorder %s18, 0
      %p113 = por %p111, %p112
      %p114 = scmp.le.s32.totalorder 1, %s12
      %p115 = scmp.lt.s32.totalorder %s12, 3
      %p116 = pnand %p114, %p115
      %p117 = pneg %p116
      // Predicated region
      $region9: #{tpu_custom_call.1} parent=5 // pred_check
        _
      $region10: #{tpu_custom_call.1} parent=5 // pred_check_branch
        %119 = sbr.rel (%p116) target = $region12
      $region11: #{tpu_custom_call.1} parent=5 // pred_region
        %s120 = ssub.s32 %s12, 1
        // Predicated region
        $region13: #{tpu_custom_call.1} parent=11 // pred_check
          %p121 = pneg %p59
        $region14: #{tpu_custom_call.1} parent=11 // pred_check_branch
          %123 = sbr.rel (%p121) target = $region16
        $region15: #{tpu_custom_call.1} parent=11 // pred_region
          _
        $region16: #{tpu_custom_call.1} parent=11 // pred_fallthru
          _
        // Predicated region
        $region17: #{tpu_custom_call.1} parent=11 // pred_check
          %p124 = pneg %p80
        $region18: #{tpu_custom_call.1} parent=11 // pred_check_branch
          %126 = sbr.rel (%p124) target = $region20
        $region19: #{tpu_custom_call.1} parent=11 // pred_region
          _
        $region20: #{tpu_custom_call.1} parent=11 // pred_fallthru
          _
      $region12: #{tpu_custom_call.1} parent=5 // pred_fallthru
        _
      %p127 = scmp.lt.s32.totalorder %s12, 2
      // Predicated region
      $region21: #{tpu_custom_call.1} parent=5 // pred_check
        %p128 = pneg %p127
      $region22: #{tpu_custom_call.1} parent=5 // pred_check_branch
        %130 = sbr.rel (%p128) target = $region24
      $region23: #{tpu_custom_call.1} parent=5 // pred_region
        // Predicated region
        $region25: #{tpu_custom_call.1} parent=23 // pred_check
          %p131 = pneg %p32
        $region26: #{tpu_custom_call.1} parent=23 // pred_check_branch
          %133 = sbr.rel (%p131) target = $region28
        $region27: #{tpu_custom_call.1} parent=23 // pred_region
          %p134 = scmp.lt.s32.totalorder %s12, 1
          %s135 = scalar_select %p134, %s12, 1
          %s136 = smul.addr %s135, 8
          %s137 = scalar_lea.vmem %s0, %s136
        $region28: #{tpu_custom_call.1} parent=23 // pred_fallthru
          _
      $region24: #{tpu_custom_call.1} parent=5 // pred_fallthru
        _
      %p138 = scmp.le.s32.totalorder 1, %s12
      %p139 = scmp.lt.s32.totalorder %s12, 3
      %p140 = pnand %p138, %p139
      %p141 = pneg %p140
      // Predicated region
      $region29: #{tpu_custom_call.1} parent=5 // pred_check
        _
      $region30: #{tpu_custom_call.1} parent=5 // pred_check_branch
        %143 = sbr.rel (%p140) target = $region32
      $region31: #{tpu_custom_call.1} parent=5 // pred_region
        %s144 = ssub.s32 %s12, 1
        %p145 = scmp.lt.s32.totalorder %s17, 1
        %s146 = scalar_select %p145, %s17, 1
        %s147 = smul.addr %s146, 8
        %s148 = scalar_lea.vmem %s0, %s147
        %p149 = pneg %p38
        %p150 = pneg %p35
        %p151 = pneg %p59
        %p152 = pneg %p56
        %p153 = pneg %p80
        %p154 = pneg %p77
        %p155 = pneg %p106
        %p156 = pneg %p103
        %s157 = sand.u32 %s93, 1
        %s158 = scalar_lea.sflag [#allocation3], %s157
        %s159 = sand.u32 %s93, 1
        %s160 = smul.addr %s159, 8
        %s161 = scalar_lea.vmem [#allocation2], %s160
        %p162 = scmp.lt.s32.totalorder %s17, 1
        %s163 = scalar_select %p162, %s17, 1
        %s164 = smul.addr %s163, 8
        %s165 = scalar_lea.vmem %s0, %s164
        %v167 = vld [vmem:[%s165] sm:$0xff]
        %v168 = vpack.c.bf16 %v167, %v167
        %v169 = vld [vmem:[%s1] sm:$0xff]
        %v170 = vld [vmem:[%s1 + $0x8] sm:$0xff]
        %v171 = vld [vmem:[%s1 + $0x10] sm:$0xff]
        %v172 = vld [vmem:[%s1 + $0x18] sm:$0xff]
        %v173 = vld [vmem:[%s1 + $0x20] sm:$0xff]
        %v174 = vld [vmem:[%s1 + $0x28] sm:$0xff]
        %v175 = vld [vmem:[%s1 + $0x30] sm:$0xff]
        %v176 = vld [vmem:[%s1 + $0x38] sm:$0xff]
        %v177 = vld [vmem:[%s1 + $0x40] sm:$0xff]
        %v178 = vld [vmem:[%s1 + $0x48] sm:$0xff]
        %v179 = vld [vmem:[%s1 + $0x50] sm:$0xff]
        %v180 = vld [vmem:[%s1 + $0x58] sm:$0xff]
        %v181 = vpack.c.bf16 %v170, %v169
        %v182 = vpack.c.bf16 %v172, %v171
        %v183 = vpack.c.bf16 %v174, %v173
        %v184 = vpack.c.bf16 %v176, %v175
        %v185 = vpack.c.bf16 %v178, %v177
        %v186 = vpack.c.bf16 %v180, %v179
        %v187 = vld [vmem:[%s2] sm:$0x1]
        %v188 = vld [vmem:[%s2 + $0x1] sm:$0x1]
        %v189 = vld [vmem:[%s2 + $0x2] sm:$0x1]
        %v191 = vlaneseq
        %v192 = vshrl.u32 %v191, 7
        %v193 = vsub.s32 0, %v192
        %v194 = vrot.slane %v187, %v193
        %vm196 = vcmask 261120
        %v198 = vsel %vm196, %v168, 0
        %200 = vmatprep.subr.bf16.mxu0 0
        %201 = vmatpush1.bf16.msra.mxu0 %v181
        %202 = vmatprep.subr.bf16.mxu0 0
        %203 = vmatpush1.bf16.msra.mxu0 %v182
        %204 = vmatprep.subr.bf16.mxu0 0
        %205 = vmatpush1.bf16.msra.mxu0 0
        %206 = vmatprep.subr.bf16.mxu0 0
        %207 = vmatpush1.bf16.msra.mxu0 0
        %208 = vmatprep.subr.bf16.mxu0 0
        %209 = vmatpush1.bf16.msra.mxu0 0
        %210 = vmatprep.subr.bf16.mxu0 0
        %211 = vmatpush1.bf16.msra.mxu0 0
        %212 = vmatprep.subr.bf16.mxu0 0
        %213 = vmatpush1.bf16.msra.mxu0 0
        %214 = vmatprep.subr.bf16.mxu0 0
        %215 = vmatpush1.bf16.msra.mxu0 0
        %216 = vmatprep.subr.bf16.mxu0 0
        %217 = vmatpush1.bf16.msra.mxu0 0
        %218 = vmatprep.subr.bf16.mxu0 0
        %219 = vmatpush1.bf16.msra.mxu0 0
        %220 = vmatprep.subr.bf16.mxu0 0
        %221 = vmatpush1.bf16.msra.mxu0 0
        %222 = vmatprep.subr.bf16.mxu0 0
        %223 = vmatpush1.bf16.msra.mxu0 0
        %224 = vmatprep.subr.bf16.mxu0 0
        %225 = vmatpush1.bf16.msra.mxu0 0
        %226 = vmatprep.subr.bf16.mxu0 0
        %227 = vmatpush1.bf16.msra.mxu0 0
        %228 = vmatprep.subr.bf16.mxu0 0
        %229 = vmatpush1.bf16.msra.mxu0 0
        %230 = vmatprep.subr.bf16.mxu0 0
        %231 = vmatpush1.bf16.msra.mxu0 0
        %232 = vmatprep.mubr.bf16.mxu0 0
        %233 = vmatmul.mubr.bf16.gmra.mrb[0].mxu0 %v198
        %v234 = vpop.f32.mrb[0].mxu0
        %v235 = vadd.f32 %v194, %v234
        %v236 = vpop.f32.mrb[0].mxu0
        %v237 = vpop.f32.mrb[0].mxu0
        %v238 = vpop.f32.mrb[0].mxu0
        %239 = vdwg.mxu0
        %v241 = vlaneseq
        %v242 = vshrl.u32 %v241, 7
        %v243 = vsub.s32 0, %v242
        %v244 = vrot.slane %v188, %v243
        %246 = vmatprep.subr.bf16.mxu0 0
        %247 = vmatpush1.bf16.msra.mxu0 %v183
        %248 = vmatprep.subr.bf16.mxu0 0
        %249 = vmatpush1.bf16.msra.mxu0 %v184
        %250 = vmatprep.subr.bf16.mxu0 0
        %251 = vmatpush1.bf16.msra.mxu0 0
        %252 = vmatprep.subr.bf16.mxu0 0
        %253 = vmatpush1.bf16.msra.mxu0 0
        %254 = vmatprep.subr.bf16.mxu0 0
        %255 = vmatpush1.bf16.msra.mxu0 0
        %256 = vmatprep.subr.bf16.mxu0 0
        %257 = vmatpush1.bf16.msra.mxu0 0
        %258 = vmatprep.subr.bf16.mxu0 0
        %259 = vmatpush1.bf16.msra.mxu0 0
        %260 = vmatprep.subr.bf16.mxu0 0
        %261 = vmatpush1.bf16.msra.mxu0 0
        %262 = vmatprep.subr.bf16.mxu0 0
        %263 = vmatpush1.bf16.msra.mxu0 0
        %264 = vmatprep.subr.bf16.mxu0 0
        %265 = vmatpush1.bf16.msra.mxu0 0
        %266 = vmatprep.subr.bf16.mxu0 0
        %267 = vmatpush1.bf16.msra.mxu0 0
        %268 = vmatprep.subr.bf16.mxu0 0
        %269 = vmatpush1.bf16.msra.mxu0 0
        %270 = vmatprep.subr.bf16.mxu0 0
        %271 = vmatpush1.bf16.msra.mxu0 0
        %272 = vmatprep.subr.bf16.mxu0 0
        %273 = vmatpush1.bf16.msra.mxu0 0
        %274 = vmatprep.subr.bf16.mxu0 0
        %275 = vmatpush1.bf16.msra.mxu0 0
        %276 = vmatprep.subr.bf16.mxu0 0
        %277 = vmatpush1.bf16.msra.mxu0 0
        %278 = vmatprep.mubr.bf16.mxu0 0
        %279 = vmatmul.mubr.bf16.gmra.mrb[0].mxu0 %v198
        %v280 = vpop.f32.mrb[0].mxu0
        %v281 = vadd.f32 %v244, %v280
        %v282 = vpop.f32.mrb[0].mxu0
        %v283 = vpop.f32.mrb[0].mxu0
        %v284 = vpop.f32.mrb[0].mxu0
        %285 = vdwg.mxu0
        %v287 = vlaneseq
        %v288 = vshrl.u32 %v287, 7
        %v289 = vsub.s32 0, %v288
        %v290 = vrot.slane %v189, %v289
        %292 = vmatprep.subr.bf16.mxu0 0
        %293 = vmatpush1.bf16.msra.mxu0 %v185
        %294 = vmatprep.subr.bf16.mxu0 0
        %295 = vmatpush1.bf16.msra.mxu0 %v186
        %296 = vmatprep.subr.bf16.mxu0 0
        %297 = vmatpush1.bf16.msra.mxu0 0
        %298 = vmatprep.subr.bf16.mxu0 0
        %299 = vmatpush1.bf16.msra.mxu0 0
        %300 = vmatprep.subr.bf16.mxu0 0
        %301 = vmatpush1.bf16.msra.mxu0 0
        %302 = vmatprep.subr.bf16.mxu0 0
        %303 = vmatpush1.bf16.msra.mxu0 0
        %304 = vmatprep.subr.bf16.mxu0 0
        %305 = vmatpush1.bf16.msra.mxu0 0
        %306 = vmatprep.subr.bf16.mxu0 0
        %307 = vmatpush1.bf16.msra.mxu0 0
        %308 = vmatprep.subr.bf16.mxu0 0
        %309 = vmatpush1.bf16.msra.mxu0 0
        %310 = vmatprep.subr.bf16.mxu0 0
        %311 = vmatpush1.bf16.msra.mxu0 0
        %312 = vmatprep.subr.bf16.mxu0 0
        %313 = vmatpush1.bf16.msra.mxu0 0
        %314 = vmatprep.subr.bf16.mxu0 0
        %315 = vmatpush1.bf16.msra.mxu0 0
        %316 = vmatprep.subr.bf16.mxu0 0
        %317 = vmatpush1.bf16.msra.mxu0 0
        %318 = vmatprep.subr.bf16.mxu0 0
        %319 = vmatpush1.bf16.msra.mxu0 0
        %320 = vmatprep.subr.bf16.mxu0 0
        %321 = vmatpush1.bf16.msra.mxu0 0
        %322 = vmatprep.subr.bf16.mxu0 0
        %323 = vmatpush1.bf16.msra.mxu0 0
        %324 = vmatprep.mubr.bf16.mxu0 0
        %325 = vmatmul.mubr.bf16.gmra.mrb[0].mxu0 %v198
        %v326 = vpop.f32.mrb[0].mxu0
        %v327 = vadd.f32 %v290, %v326
        %v328 = vpop.f32.mrb[0].mxu0
        %v329 = vpop.f32.mrb[0].mxu0
        %v330 = vpop.f32.mrb[0].mxu0
        %331 = vdwg.mxu0
        %v332 = vpack.c.bf16 %v235, %v235
        %v333 = vpack.c.bf16 %v281, %v281
        %vm334 = vcmask 130048
        %v336 = vsel %vm334, %v332, 0
        %v339 = vsel %vm334, %v333, 0
        %341 = vmatprep.subr.bf16.mxu0 0
        %342 = vmatpush1.bf16.xpose.msra.mxu0 %v339
        %343 = vmatprep.subr.bf16.mxu0 0
        %344 = vmatpush1.bf16.xpose.msra.mxu0 0
        %345 = vmatprep.subr.bf16.mxu0 0
        %346 = vmatpush1.bf16.xpose.msra.mxu0 0
        %347 = vmatprep.subr.bf16.mxu0 0
        %348 = vmatpush1.bf16.xpose.msra.mxu0 0
        %349 = vmatprep.subr.bf16.mxu0 0
        %350 = vmatpush1.bf16.xpose.msra.mxu0 0
        %351 = vmatprep.subr.bf16.mxu0 0
        %352 = vmatpush1.bf16.xpose.msra.mxu0 0
        %353 = vmatprep.subr.bf16.mxu0 0
        %354 = vmatpush1.bf16.xpose.msra.mxu0 0
        %355 = vmatprep.subr.bf16.mxu0 0
        %356 = vmatpush1.bf16.xpose.msra.mxu0 0
        %357 = vmatprep.subr.bf16.mxu0 0
        %358 = vmatpush1.bf16.xpose.msra.mxu0 0
        %359 = vmatprep.subr.bf16.mxu0 0
        %360 = vmatpush1.bf16.xpose.msra.mxu0 0
        %361 = vmatprep.subr.bf16.mxu0 0
        %362 = vmatpush1.bf16.xpose.msra.mxu0 0
        %363 = vmatprep.subr.bf16.mxu0 0
        %364 = vmatpush1.bf16.xpose.msra.mxu0 0
        %365 = vmatprep.subr.bf16.mxu0 0
        %366 = vmatpush1.bf16.xpose.msra.mxu0 0
        %367 = vmatprep.subr.bf16.mxu0 0
        %368 = vmatpush1.bf16.xpose.msra.mxu0 0
        %369 = vmatprep.subr.bf16.mxu0 0
        %370 = vmatpush1.bf16.xpose.msra.mxu0 0
        %371 = vmatprep.subr.bf16.mxu0 0
        %372 = vmatpush1.bf16.xpose.msra.mxu0 0
        %373 = vmatprep.mubr.bf16.mxu0 0
        %374 = vmatmul.mubr.bf16.gmra.mrb[0].mxu0 %v336
        %v375 = vpop.f32.mrb[0].mxu0
        %v376 = vadd.f32 0.0, %v375
        %v377 = vpop.f32.mrb[0].mxu0
        %v378 = vpop.f32.mrb[0].mxu0
        %v379 = vpop.f32.mrb[0].mxu0
        %380 = vdwg.mxu0
        %vm381 = vcmask 64512
        %v382 = vsel %vm381, %v376, -inf
        %383 = vmax.xlane.f32.xlu0 %v382
        %v384 = vpop.xlane.xlu0 %383
        %v385 = vsub.f32 %v376, %v384
        %v386 = vmul.f32 %v385, 1.442695
        %v387 = vpow.pop %v386
        %v388 = vsel %vm381, %v387, 0.0
        %389 = vadd.xlane.f32.xlu0 %v388
        %v390 = vpop.xlane.xlu0 %389
        %v391 = vrcp.pop %v390
        %v392 = vmul.f32 %v387, %v391
        %v393 = vpack.c.bf16 %v327, %v327
        %v394 = vpack.c.bf16 %v392, %v392
        %v396 = vsel %vm381, %v394, 0
        %vm398 = vcmask 1043456
        %v400 = vsel %vm398, %v393, 0
        %402 = vmatprep.subr.bf16.mxu0 0
        %403 = vmatpush1.bf16.msra.mxu0 %v400
        %404 = vmatprep.subr.bf16.mxu0 0
        %405 = vmatpush1.bf16.msra.mxu0 0
        %406 = vmatprep.subr.bf16.mxu0 0
        %407 = vmatpush1.bf16.msra.mxu0 0
        %408 = vmatprep.subr.bf16.mxu0 0
        %409 = vmatpush1.bf16.msra.mxu0 0
        %410 = vmatprep.subr.bf16.mxu0 0
        %411 = vmatpush1.bf16.msra.mxu0 0
        %412 = vmatprep.subr.bf16.mxu0 0
        %413 = vmatpush1.bf16.msra.mxu0 0
        %414 = vmatprep.subr.bf16.mxu0 0
        %415 = vmatpush1.bf16.msra.mxu0 0
        %416 = vmatprep.subr.bf16.mxu0 0
        %417 = vmatpush1.bf16.msra.mxu0 0
        %418 = vmatprep.subr.bf16.mxu0 0
        %419 = vmatpush1.bf16.msra.mxu0 0
        %420 = vmatprep.subr.bf16.mxu0 0
        %421 = vmatpush1.bf16.msra.mxu0 0
        %422 = vmatprep.subr.bf16.mxu0 0
        %423 = vmatpush1.bf16.msra.mxu0 0
        %424 = vmatprep.subr.bf16.mxu0 0
        %425 = vmatpush1.bf16.msra.mxu0 0
        %426 = vmatprep.subr.bf16.mxu0 0
        %427 = vmatpush1.bf16.msra.mxu0 0
        %428 = vmatprep.subr.bf16.mxu0 0
        %429 = vmatpush1.bf16.msra.mxu0 0
        %430 = vmatprep.subr.bf16.mxu0 0
        %431 = vmatpush1.bf16.msra.mxu0 0
        %432 = vmatprep.subr.bf16.mxu0 0
        %433 = vmatpush1.bf16.msra.mxu0 0
        %434 = vmatprep.mubr.bf16.mxu0 0
        %435 = vmatmul.mubr.bf16.gmra.mrb[0].mxu0 %v396
        %v436 = vpop.f32.mrb[0].mxu0
        %v437 = vadd.f32 0.0, %v436
        %v438 = vpop.f32.mrb[0].mxu0
        %v439 = vpop.f32.mrb[0].mxu0
        %v440 = vpop.f32.mrb[0].mxu0
        %441 = vdwg.mxu0
        %442 = vst.msk [vmem:[%s161] sm:$0xff] %vm334, %v437
        %s443 = sand.u32 %s93, 1
        %s444 = scalar_lea.sflag [#allocation3], %s443
        %s445 = sand.u32 %s93, 1
        %s446 = smul.addr %s445, 8
        %s447 = scalar_lea.vmem [#allocation2], %s446
        // Predicated region
        $region33: #{tpu_custom_call.1} parent=31 // pred_check
          %p448 = pneg %p103
        $region34: #{tpu_custom_call.1} parent=31 // pred_check_branch
          %450 = sbr.rel (%p448) target = $region36
        $region35: #{tpu_custom_call.1} parent=31 // pred_region
          %s452 = ssub.s32 128, 128
          %453 = vsyncadd %s444, %s452
          %s454 = smul.addr %s17, 128
          %s455 = scalar_lea.hbm %s3, %s454
          %s457 = sshll.u32 %s447, 4
          %s458 = int_to_ptr.vmem [resolvable:$true] %s457
          %460 = dma.vmem_to_hbm [thread:$0]  %s458, 128, %s455, %s444
        $region36: #{tpu_custom_call.1} parent=31 // pred_fallthru
          _
      $region32: #{tpu_custom_call.1} parent=5 // pred_fallthru
        _
      %p461 = scmp.le.s32.totalorder 2, %s12
      // Predicated region
      $region37: #{tpu_custom_call.1} parent=5 // pred_check
        %p462 = pneg %p461
      $region38: #{tpu_custom_call.1} parent=5 // pred_check_branch
        %464 = sbr.rel (%p462) target = $region40
      $region39: #{tpu_custom_call.1} parent=5 // pred_region
        %s465 = ssub.s32 %s12, 2
        // Predicated region
        $region41: #{tpu_custom_call.1} parent=39 // pred_check
          %p466 = pneg %p109
        $region42: #{tpu_custom_call.1} parent=39 // pred_check_branch
          %468 = sbr.rel (%p466) target = $region44
        $region43: #{tpu_custom_call.1} parent=39 // pred_region
          %s469 = sand.u32 %s94, 1
          %s470 = scalar_lea.sflag [#allocation3], %s469
          %s471 = sand.u32 %s94, 1
          %s472 = smul.addr %s471, 8
          %s473 = scalar_lea.vmem [#allocation2], %s472
          %474 = dma.done %s470, 128
        $region44: #{tpu_custom_call.1} parent=39 // pred_fallthru
          _
      $region40: #{tpu_custom_call.1} parent=5 // pred_fallthru
        _
    $region6: #{tpu_custom_call.1} parent=1 // loop_footer
      %s16 = sadd.s32 1, %s12
    $region7: #{tpu_custom_call.1} parent=1 // loop_footer_branch
      %11 = sbr.rel target = $region3
    $region8: #{tpu_custom_call.1} parent=1 // loop_exit
      _
    %475 = vsyncpa [#allocation3], 1
    %s476 = scalar_lea.sflag [#allocation3], 1
    %477 = vsyncpa %s476, 1

</llo_original>
